<compile_context>
chip_gen: v7x
topology: tpu7x:2x2x1
jax: 0.10.0
libtpu: 0.0.40
codegen_flags: <defaults>
</compile_context>

<pallas_src>
import jax
import jax.numpy as jnp
from jax.experimental import pallas as pl
from jax.experimental.pallas import tpu as pltpu


_MAX_TILE_ELEMS = 512 * 1024   # per-step element cap; amortizes ~0.35us/step grid overhead


def _chip_config():
    """Generation-specific knobs (per perf review)."""
    try:
        kind = jax.devices()[0].device_kind.lower()
    except Exception:
        kind = ""
    if "7" in kind:                       # v7x-class: 2 TensorCores, 64 MiB VMEM per TC
        return dict(num_partials=2, tile_budget=20 << 20, vmem_limit=48 << 20)
    if ("v5" in kind) or ("v6" in kind):  # single TC, 128 MiB physical VMEM
        return dict(num_partials=1, tile_budget=24 << 20, vmem_limit=64 << 20)
    return dict(num_partials=1, tile_budget=12 << 20, vmem_limit=32 << 20)  # safe default


def _lane_dense_view(x, y, tile_budget):
    """Present inputs as a lane-dense 2D (rows, lanes) view with no HBM copy when possible."""
    B, C = x.shape
    N = B * C
    itembytes = x.dtype.itemsize + y.dtype.itemsize
    # Already lane-dense and an 8-row tile fits the pipeline budget: use as-is (no reshape).
    if C % 128 == 0 and 2 * 8 * C * itembytes <= tile_budget:
        return x, y
    # Flatten to (N/L, L) when the flat size factors by a lane-dense width.
    for lanes in (512, 1024, 2048, 4096, 256, 128):
        if N % lanes == 0:
            return x.reshape(N // lanes, lanes), y.reshape(N // lanes, lanes)
    # TODO(synk): odd C with no 128-divisible factorization keeps (B, C) tiling; correct
    # but lane-padded (wastes VPU/VMEM when C << 128).
    return x, y


def _pick_tile_rows(rows, lanes, itembytes, tile_budget):
    """Largest row tile (multiple of 8) fitting the double-buffered VMEM budget."""
    bytes_per_row = 2 * lanes * itembytes          # 2 pipeline buffers per input stream
    fit = max(8, tile_budget // bytes_per_row)
    cap = max(8, _MAX_TILE_ELEMS // lanes)
    tile = max(8, (min(fit, cap) // 8) * 8)
    if rows >= 8:
        tile = max(8, min(tile, (rows // 8) * 8))  # keep tile <= rows
    else:
        tile = rows                                # tiny input: full-extent block
    return tile


def weighted_multilabel_loss(outputs, targets, weights):
    """Pallas implementation of WeightedMultilabel.forward."""
    B, C = outputs.shape
    assert targets.shape == (B, C)
    N = B * C

    cfg = _chip_config()
    x2d, y2d = _lane_dense_view(outputs, targets, cfg["tile_budget"])
    rows, lanes = x2d.shape

    itembytes = outputs.dtype.itemsize + targets.dtype.itemsize
    tile_rows = _pick_tile_rows(rows, lanes, itembytes, cfg["tile_budget"])
    total_blocks = pl.cdiv(rows, tile_rows)
    num_partials = max(1, min(cfg["num_partials"], total_blocks))   # degenerate-grid guard
    steps_per_part = pl.cdiv(total_blocks, num_partials)

    acc_rows = 8 if (tile_rows >= 8 and tile_rows % 8 == 0) else tile_rows
    # Masking is needed only if a tail block overruns `rows` or the grid overshoots
    # total_blocks (clamped duplicate block on the second partial).
    has_partial = (rows % tile_rows != 0) or (num_partials * steps_per_part != total_blocks)

    def _fold(z):
        # Reduce a (tile_rows, lanes) tile into the (acc_rows, lanes) accumulator shape
        # using pure VALU adds (no per-step cross-sublane XLU work).
        if tile_rows == acc_rows:
            return z
        return jnp.sum(z.reshape(tile_rows // acc_rows, acc_rows, lanes), axis=0)

    def kernel(x_ref, y_ref, out_ref, acc_ref):
        p = pl.program_id(0)      # partial-sum index ("parallel" axis)
        i = pl.program_id(1)      # reduction step within this partial ("arbitrary")

        @pl.when(i == 0)
        def _():
            acc_ref[...] = jnp.zeros_like(acc_ref)

        x = x_ref[...].astype(jnp.float32)
        y = y_ref[...].astype(jnp.float32)

        # outputs[outputs > 13] = 13 ; outputs[outputs < -13] = -13
        x = jnp.clip(x, -13.0, 13.0)

        # Numerically stable BCE-with-logits (matches torch BCEWithLogitsLoss):
        #   max(x, 0) - x*y + log1p(exp(-|x|))
        per_elem = jnp.maximum(x, 0.0) - x * y + jnp.log1p(jnp.exp(-jnp.abs(x)))

        if has_partial:
            # NOTE: mask uses the UN-clamped block index; jnp.where is a select, so any
            # NaN/Inf computed from unspecified VMEM padding in the tail/clamped block is
            # discarded, never accumulated.
            block_idx = p * steps_per_part + i
            overruns = (block_idx * tile_rows + tile_rows) > rows

            @pl.when(jnp.logical_not(overruns))
            def _():  # interior blocks: no masking work at all
                acc_ref[...] += _fold(per_elem)

            @pl.when(overruns)
            def _():  # tail / clamped-duplicate block only
                r = jax.lax.broadcasted_iota(jnp.int32, per_elem.shape, 0)
                valid = (block_idx * tile_rows + r) < rows
                acc_ref[...] += _fold(jnp.where(valid, per_elem, 0.0))
        else:
            acc_ref[...] += _fold(per_elem)

        # Epilogue of this partial: single cross-sublane/lane reduce + scalar SMEM store.
        @pl.when(i == pl.num_programs(1) - 1)
        def _():
            out_ref[0, 0] = jnp.sum(acc_ref[...])

    def in_index_map(p, i):
        # Clamp so DMAs never target a block index past the array (overshoot blocks are
        # masked to zero inside the kernel).
        return (jnp.minimum(p * steps_per_part + i, total_blocks - 1), 0)

    cost = pl.CostEstimate(
        flops=7 * N,
        transcendentals=2 * N,
        bytes_accessed=N * itembytes + num_partials * 4,
    )

    partial_sums = pl.pallas_call(
        kernel,
        out_shape=jax.ShapeDtypeStruct((num_partials, 1), jnp.float32),
        grid_spec=pltpu.PrefetchScalarGridSpec(
            num_scalar_prefetch=0,
            grid=(num_partials, steps_per_part),
            in_specs=[
                pl.BlockSpec((tile_rows, lanes), in_index_map),
                pl.BlockSpec((tile_rows, lanes), in_index_map),
            ],
            out_specs=pl.BlockSpec(
                (1, 1), lambda p, i: (p, 0), memory_space=pltpu.SMEM
            ),
            scratch_shapes=[pltpu.VMEM((acc_rows, lanes), jnp.float32)],
        ),
        compiler_params=pltpu.CompilerParams(
            dimension_semantics=("parallel", "arbitrary"),
            vmem_limit_bytes=cfg["vmem_limit"],
        ),
        cost_estimate=cost,
    )(x2d, y2d)

    mean_bce = jnp.sum(partial_sums) / jnp.float32(N)
    # (scalar_loss * weights).mean() == scalar_loss * weights.mean(); exact only because
    # BCEWithLogitsLoss() default reduction='mean' yields a scalar.
    return mean_bce * jnp.mean(weights.astype(jnp.float32))


if __name__ == "__main__":
    key = jax.random.PRNGKey(0)
    k1, k2, k3 = jax.random.split(key, 3)

    def ref_fn(x, y, w):
        xf = jnp.clip(x.astype(jnp.float32), -13.0, 13.0)
        yf = y.astype(jnp.float32)
        bce = jnp.mean(jnp.maximum(xf, 0.0) - xf * yf + jnp.log1p(jnp.exp(-jnp.abs(xf))))
        return bce * jnp.mean(w.astype(jnp.float32))

    def make_case(B, C, dtype):
        o = (jax.random.normal(k1, (B, C), dtype=jnp.float32) * 8.0).astype(dtype)
        t = (jax.random.uniform(k2, (B, C)) > 0.5).astype(dtype)
        w = jax.random.uniform(k3, (C,), dtype=jnp.float32) + 0.5
        return o, t, w

    cases = [
        (100, 128, jnp.float32),   # C % 128 == 0: used as-is; 2 blocks + masked tail
        (64, 72, jnp.float32),     # flattened to (9, 512); 2 blocks + masked tail
        (20, 14, jnp.float32),     # odd small C fallback path; 2 blocks + masked tail
        (100, 128, jnp.bfloat16),  # bf16 inputs (half HBM traffic), f32 compute in-kernel
    ]
    for B, C, dt in cases:
        o, t, w = make_case(B, C, dt)
        got = jax.block_until_ready(weighted_multilabel_loss(o, t, w))
        want = ref_fn(o, t, w)
        assert jnp.allclose(got, want, rtol=2e-5, atol=1e-6), (B, C, dt, got, want)

    print("KERNEL_OK")
</pallas_src>

<mosaic_0001>
module attributes {stable_mosaic.version = 11 : i64} {
  func.func @kernel(%arg0: i32, %arg1: i32, %arg2: memref<96x128xf32, #tpu.memory_space<vmem>>, %arg3: memref<96x128xf32, #tpu.memory_space<vmem>>, %arg4: memref<1x1xf32, #tpu.memory_space<smem>>, %arg5: memref<8x128xf32, #tpu.memory_space<vmem>>) attributes {dimension_semantics = [#tpu.dimension_semantics<parallel>, #tpu.dimension_semantics<arbitrary>], iteration_bounds = array<i64: 1, 2>, scalar_prefetch = 0 : i64, scratch_operands = 1 : i64, tpu.core_type = #tpu.core_type<tc>, window_params = [{transform_indices = @transform_0, window_bounds = array<i64: 96, 128>}, {transform_indices = @transform_1, window_bounds = array<i64: 96, 128>}, {transform_indices = @transform_2, window_bounds = array<i64: 1, 1>}]} {
    %c0_i32 = arith.constant 0 : i32
    %0 = arith.cmpi eq, %arg1, %c0_i32 : i32
    %1 = arith.extui %0 : i1 to i32
    %c0_i32_0 = arith.constant 0 : i32
    %2 = arith.cmpi ne, %1, %c0_i32_0 : i32
    scf.if %2 {
      %cst_11 = arith.constant 0.000000e+00 : f32
      %32 = vector.broadcast %cst_11 : f32 to vector<8x128xf32>
      %c0_12 = arith.constant 0 : index
      %c0_13 = arith.constant 0 : index
      %33 = vector.load %arg5[%c0_12, %c0_13] : memref<8x128xf32, #tpu.memory_space<vmem>>, vector<8x128xf32>
      tpu.vector_store %arg5[%c0_12, %c0_13], %32 {strides = array<i32>} : memref<8x128xf32, #tpu.memory_space<vmem>>, vector<8x128xf32>,
    } else {
    }
    %c0 = arith.constant 0 : index
    %c0_1 = arith.constant 0 : index
    %3 = vector.load %arg2[%c0, %c0_1] : memref<96x128xf32, #tpu.memory_space<vmem>>, vector<96x128xf32>
    %c0_2 = arith.constant 0 : index
    %c0_3 = arith.constant 0 : index
    %4 = vector.load %arg3[%c0_2, %c0_3] : memref<96x128xf32, #tpu.memory_space<vmem>>, vector<96x128xf32>
    %cst = arith.constant -1.300000e+01 : f32
    %cst_4 = arith.constant 1.300000e+01 : f32
    %5 = vector.broadcast %cst : f32 to vector<96x128xf32>
    %6 = arith.maximumf %5, %3 : vector<96x128xf32>
    %7 = vector.broadcast %cst_4 : f32 to vector<96x128xf32>
    %8 = arith.minimumf %7, %6 : vector<96x128xf32>
    %cst_5 = arith.constant 0.000000e+00 : f32
    %9 = vector.broadcast %cst_5 : f32 to vector<96x128xf32>
    %10 = arith.maximumf %8, %9 : vector<96x128xf32>
    %11 = arith.mulf %8, %4 : vector<96x128xf32>
    %12 = arith.subf %10, %11 : vector<96x128xf32>
    %13 = math.absf %8 : vector<96x128xf32>
    %cst_6 = arith.constant 0.000000e+00 : f32
    %14 = vector.broadcast %cst_6 : f32 to vector<96x128xf32>
    %15 = arith.subf %14, %13 : vector<96x128xf32>
    %16 = math.exp %15 : vector<96x128xf32>
    %17 = math.log1p %16 : vector<96x128xf32>
    %18 = arith.addf %12, %17 : vector<96x128xf32>
    %c2_i32 = arith.constant 2 : i32
    %19 = arith.muli %arg0, %c2_i32 : i32
    %20 = arith.addi %19, %arg1 : i32
    %c96_i32 = arith.constant 96 : i32
    %21 = arith.muli %20, %c96_i32 : i32
    %c96_i32_7 = arith.constant 96 : i32
    %22 = arith.addi %21, %c96_i32_7 : i32
    %c100_i32 = arith.constant 100 : i32
    %23 = arith.cmpi sgt, %22, %c100_i32 : i32
    %true = arith.constant true
    %24 = arith.xori %23, %true : i1
    %25 = arith.extui %24 : i1 to i32
    %c0_i32_8 = arith.constant 0 : i32
    %26 = arith.cmpi ne, %25, %c0_i32_8 : i32
    scf.if %26 {
      %c0_11 = arith.constant 0 : index
      %c0_12 = arith.constant 0 : index
      %32 = vector.load %arg5[%c0_11, %c0_12] : memref<8x128xf32, #tpu.memory_space<vmem>>, vector<8x128xf32>
      %33 = vector.shape_cast %18 : vector<96x128xf32> to vector<12x8x128xf32>
      %cst_13 = arith.constant dense<0.000000e+00> : vector<8x128xf32>
      %34 = vector.multi_reduction <add>, %33, %cst_13 [0] : vector<12x8x128xf32> to vector<8x128xf32>
      %35 = arith.addf %32, %34 : vector<8x128xf32>
      %c0_14 = arith.constant 0 : index
      %c0_15 = arith.constant 0 : index
      %36 = vector.load %arg5[%c0_14, %c0_15] : memref<8x128xf32, #tpu.memory_space<vmem>>, vector<8x128xf32>
      tpu.vector_store %arg5[%c0_14, %c0_15], %35 {strides = array<i32>} : memref<8x128xf32, #tpu.memory_space<vmem>>, vector<8x128xf32>,
    } else {
    }
    %27 = arith.extui %23 : i1 to i32
    %c0_i32_9 = arith.constant 0 : i32
    %28 = arith.cmpi ne, %27, %c0_i32_9 : i32
    scf.if %28 {
      %32 = tpu.iota {dimensions = array<i32: 0>} : vector<96x128xi32>
      %c96_i32_11 = arith.constant 96 : i32
      %33 = arith.muli %20, %c96_i32_11 : i32
      %34 = vector.broadcast %33 : i32 to vector<96x128xi32>
      %35 = arith.addi %34, %32 : vector<96x128xi32>
      %c100_i32_12 = arith.constant 100 : i32
      %36 = vector.broadcast %c100_i32_12 : i32 to vector<96x128xi32>
      %37 = arith.cmpi slt, %35, %36 : vector<96x128xi32>
      %c0_13 = arith.constant 0 : index
      %c0_14 = arith.constant 0 : index
      %38 = vector.load %arg5[%c0_13, %c0_14] : memref<8x128xf32, #tpu.memory_space<vmem>>, vector<8x128xf32>
      %cst_15 = arith.constant 0.000000e+00 : f32
      %39 = vector.broadcast %cst_15 : f32 to vector<96x128xf32>
      %40 = arith.select %37, %18, %39 : vector<96x128xi1>, vector<96x128xf32>
      %41 = vector.shape_cast %40 : vector<96x128xf32> to vector<12x8x128xf32>
      %cst_16 = arith.constant dense<0.000000e+00> : vector<8x128xf32>
      %42 = vector.multi_reduction <add>, %41, %cst_16 [0] : vector<12x8x128xf32> to vector<8x128xf32>
      %43 = arith.addf %38, %42 : vector<8x128xf32>
      %c0_17 = arith.constant 0 : index
      %c0_18 = arith.constant 0 : index
      %44 = vector.load %arg5[%c0_17, %c0_18] : memref<8x128xf32, #tpu.memory_space<vmem>>, vector<8x128xf32>
      tpu.vector_store %arg5[%c0_17, %c0_18], %43 {strides = array<i32>} : memref<8x128xf32, #tpu.memory_space<vmem>>, vector<8x128xf32>,
    } else {
    }
    %c1_i32 = arith.constant 1 : i32
    %29 = arith.cmpi eq, %arg1, %c1_i32 : i32
    %30 = arith.extui %29 : i1 to i32
    %c0_i32_10 = arith.constant 0 : i32
    %31 = arith.cmpi ne, %30, %c0_i32_10 : i32
    scf.if %31 {
      %c0_11 = arith.constant 0 : index
      %c0_12 = arith.constant 0 : index
      %32 = vector.load %arg5[%c0_11, %c0_12] : memref<8x128xf32, #tpu.memory_space<vmem>>, vector<8x128xf32>
      %33 = vector.shape_cast %32 : vector<8x128xf32> to vector<1x8x128xf32>
      %cst_13 = arith.constant dense<0.000000e+00> : vector<1xf32>
      %34 = vector.multi_reduction <add>, %33, %cst_13 [1, 2] : vector<1x8x128xf32> to vector<1xf32>
      %35 = vector.shape_cast %34 : vector<1xf32> to vector<1x1x1xf32>
      %36 = vector.extract %35[0, 0, 0] : f32 from vector<1x1x1xf32>
      %c0_14 = arith.constant 0 : index
      %c0_15 = arith.constant 0 : index
      %37 = memref.load %arg4[%c0_14, %c0_15] : memref<1x1xf32, #tpu.memory_space<smem>>
      memref.store %36, %arg4[%c0_14, %c0_15] : memref<1x1xf32, #tpu.memory_space<smem>>
    } else {
    }
    return
  }
  func.func @transform_0(%arg0: i32, %arg1: i32) -> (i32, i32) {
    %c2_i32 = arith.constant 2 : i32
    %0 = arith.muli %arg0, %c2_i32 : i32
    %1 = arith.addi %0, %arg1 : i32
    %c1_i32 = arith.constant 1 : i32
    %2 = arith.minsi %1, %c1_i32 : i32
    %c0_i32 = arith.constant 0 : i32
    %c0_i32_0 = arith.constant 0 : i32
    return %2, %c0_i32 : i32, i32
  }
  func.func @transform_1(%arg0: i32, %arg1: i32) -> (i32, i32) {
    %c2_i32 = arith.constant 2 : i32
    %0 = arith.muli %arg0, %c2_i32 : i32
    %1 = arith.addi %0, %arg1 : i32
    %c1_i32 = arith.constant 1 : i32
    %2 = arith.minsi %1, %c1_i32 : i32
    %c0_i32 = arith.constant 0 : i32
    %c0_i32_0 = arith.constant 0 : i32
    return %2, %c0_i32 : i32, i32
  }
  func.func @transform_2(%arg0: i32, %arg1: i32) -> (i32, i32) {
    %c0_i32 = arith.constant 0 : i32
    %c0_i32_0 = arith.constant 0 : i32
    return %arg0, %c0_i32 : i32, i32
  }
}

</mosaic_0001>

<llo_original>
// kernel: tpu_custom_call.1
$region0: #{tpu_custom_call.1}
  #allocation0 [shape = 'u32[]', space=smem, size = 0x4, offset = 0x4, fixed_abs, tag = 'smem constant byte address 0x4 - core index']
  #allocation1 [shape = 'u32[144,128]{1,0:T(1,128)}', space=vmem, size = 0x12000, scoped, tag = 'internal scratch']
  #allocation2 [shape = 'f32[8,128]{1,0:T(8,128)}', space=vmem, size = 0x1000, scoped, tag = 'scratch operand']
  %s0 = inlined_call_operand.hbm [shape: f32[100,128], index: 0, kind: input, shape index: {}]
  %s1 = inlined_call_operand.hbm [shape: f32[100,128], index: 1, kind: input, shape index: {}]
  %s2 = inlined_call_operand.hbm [shape: f32[1,1], index: 2, kind: output, shape index: {}]
  %s3 = sld [smem:[#allocation0]]
  $region65: #{tpu_custom_call.1} parent=0
    _
  %s5 = ssub.s32 1, %s3
  %s6 = scalar_select 0, %s5, %s3
  $region1: #{tpu_custom_call.1} parent=0
    #allocation3 [shape = 'u8[98304]{0}', space=vmem, size = 0x18000, scoped, tag = 'input window, operand 0']
    #allocation4 [shape = 's32[2]{0}', space=sflag, size = 0x8, scoped, tag = 'scoped memory for tpu_custom_call.1']
    #allocation5 [shape = 's32[2]{0}', space=sflag, size = 0x8, scoped, tag = 'scoped memory for tpu_custom_call.1']
    #allocation6 [shape = 'u8[98304]{0}', space=vmem, size = 0x18000, scoped, tag = 'input window, operand 1']
    #allocation7 [shape = 's32[2]{0}', space=sflag, size = 0x8, scoped, tag = 'scoped memory for tpu_custom_call.1']
    #allocation8 [shape = 'u8[512]{0}', space=smem, size = 0x200, scoped, tag = 'output window, operand 0, single buffered']
    %7 = vsyncpa [#allocation4], 0
    %s8 = scalar_lea.sflag [#allocation4], 1
    %9 = vsyncpa %s8, 0
    %10 = vsyncpa [#allocation7], 0
    %s11 = scalar_lea.sflag [#allocation7], 1
    %12 = vsyncpa %s11, 0
    %13 = vsyncpa [#allocation5], 0
    loop: start=0, step=1, limit=4
    $region2: #{tpu_custom_call.1} parent=1 // loop_pre_header
      _
    $region3: #{tpu_custom_call.1} parent=1 // loop_header
      %s15 = sphi 0, %s19
      %p16 = scmp.ge.s32.totalorder %s15, 4
      %s22 = sphi 0, %s34
      %s23 = sphi 0, %s30
      %s24 = sphi 0, %s22
      %s25 = sphi 0, %s23
      %s26 = sphi 0, %s24
      %s27 = sphi 0, %s25
      %s45 = sphi 0, %s47
      %s48 = sphi 0, %s45
      %s49 = sphi 0, %s48
      %s65 = sphi 0, %s49
      %s79 = sphi 0, %s81
      %s82 = sphi 0, %s79
      %s83 = sphi 0, %s82
      %s99 = sphi 0, %s83
      %s105 = sphi 0, %s107
      %s108 = sphi 0, %s105
      %s109 = sphi 0, %s108
      %s125 = sphi 0, %s109
    $region4: #{tpu_custom_call.1} parent=1 // loop_header_branch
      %18 = sbr.rel (%p16) target = $region8
    $region5: #{tpu_custom_call.1} parent=1 // loop_body
      %s20 = ssub.s32 %s15, 1
      %s21 = ssub.s32 %s15, 2
      %s28 = sadd.s32 1, %s23
      %p29 = scmp.ge.s32.totalorder %s28, 2
      %s30 = scalar_select %p29, 0, %s28
      %s31 = sadd.s32 1, %s22
      %s32 = scalar_select %p29, %s31, %s22
      %p33 = scmp.ge.s32.totalorder %s32, 1
      %s34 = scalar_select %p33, 0, %s32
      %s35 = smul.u32 %s22, 2
      %s36 = sadd.s32 %s35, %s23
      %p37 = scmp.lt.s32.totalorder %s36, 1
      %s38 = scalar_select %p37, %s36, 1
      %s39 = smul.u32 %s34, 2
      %s40 = sadd.s32 %s39, %s30
      %p41 = scmp.lt.s32.totalorder %s40, 1
      %s42 = scalar_select %p41, %s40, 1
      %s43 = ssub.s32 %s38, %s42
      %p44 = scmp.eq.s32.totalorder %s43, 0
      %s46 = sadd.s32 %s45, 1
      %s47 = scalar_select %p44, %s45, %s46
      %p50 = pneg %p44
      %p51 = scmp.eq.s32.totalorder %s15, 1
      %p52 = por %p50, %p51
      %p53 = scmp.ne.s32.totalorder %s45, %s48
      %p54 = scmp.eq.s32.totalorder %s15, 0
      %p55 = por %p53, %p54
      %p56 = scmp.ne.s32.totalorder %s45, %s48
      %p57 = scmp.eq.s32.totalorder %s20, 1
      %p58 = por %p56, %p57
      %p59 = scmp.ne.s32.totalorder %s48, %s49
      %p60 = scmp.eq.s32.totalorder %s20, 0
      %p61 = por %p59, %p60
      %p62 = scmp.ne.s32.totalorder %s48, %s49
      %p63 = scmp.eq.s32.totalorder %s21, 1
      %p64 = por %p62, %p63
      %p66 = scmp.ne.s32.totalorder %s49, %s65
      %p67 = scmp.eq.s32.totalorder %s21, 0
      %p68 = por %p66, %p67
      %s69 = smul.u32 %s22, 2
      %s70 = sadd.s32 %s69, %s23
      %p71 = scmp.lt.s32.totalorder %s70, 1
      %s72 = scalar_select %p71, %s70, 1
      %s73 = smul.u32 %s34, 2
      %s74 = sadd.s32 %s73, %s30
      %p75 = scmp.lt.s32.totalorder %s74, 1
      %s76 = scalar_select %p75, %s74, 1
      %s77 = ssub.s32 %s72, %s76
      %p78 = scmp.eq.s32.totalorder %s77, 0
      %s80 = sadd.s32 %s79, 1
      %s81 = scalar_select %p78, %s79, %s80
      %p84 = pneg %p78
      %p85 = scmp.eq.s32.totalorder %s15, 1
      %p86 = por %p84, %p85
      %p87 = scmp.ne.s32.totalorder %s79, %s82
      %p88 = scmp.eq.s32.totalorder %s15, 0
      %p89 = por %p87, %p88
      %p90 = scmp.ne.s32.totalorder %s79, %s82
      %p91 = scmp.eq.s32.totalorder %s20, 1
      %p92 = por %p90, %p91
      %p93 = scmp.ne.s32.totalorder %s82, %s83
      %p94 = scmp.eq.s32.totalorder %s20, 0
      %p95 = por %p93, %p94
      %p96 = scmp.ne.s32.totalorder %s82, %s83
      %p97 = scmp.eq.s32.totalorder %s21, 1
      %p98 = por %p96, %p97
      %p100 = scmp.ne.s32.totalorder %s83, %s99
      %p101 = scmp.eq.s32.totalorder %s21, 0
      %p102 = por %p100, %p101
      %s103 = ssub.s32 %s22, %s34
      %p104 = scmp.eq.s32.totalorder %s103, 0
      %s106 = sadd.s32 %s105, 1
      %s107 = scalar_select %p104, %s105, %s106
      %p110 = pneg %p104
      %p111 = scmp.eq.s32.totalorder %s15, 1
      %p112 = por %p110, %p111
      %p113 = scmp.ne.s32.totalorder %s105, %s108
      %p114 = scmp.eq.s32.totalorder %s15, 0
      %p115 = por %p113, %p114
      %p116 = scmp.ne.s32.totalorder %s105, %s108
      %p117 = scmp.eq.s32.totalorder %s20, 1
      %p118 = por %p116, %p117
      %p119 = scmp.ne.s32.totalorder %s108, %s109
      %p120 = scmp.eq.s32.totalorder %s20, 0
      %p121 = por %p119, %p120
      %p122 = scmp.ne.s32.totalorder %s108, %s109
      %p123 = scmp.eq.s32.totalorder %s21, 1
      %p124 = por %p122, %p123
      %p126 = scmp.ne.s32.totalorder %s109, %s125
      %p127 = scmp.eq.s32.totalorder %s21, 0
      %p128 = por %p126, %p127
      %p129 = scmp.le.s32.totalorder 1, %s15
      %p130 = scmp.lt.s32.totalorder %s15, 3
      %p131 = pnand %p129, %p130
      %p132 = pneg %p131
      // Predicated region
      $region9: #{tpu_custom_call.1} parent=5 // pred_check
        _
      $region10: #{tpu_custom_call.1} parent=5 // pred_check_branch
        %134 = sbr.rel (%p131) target = $region12
      $region11: #{tpu_custom_call.1} parent=5 // pred_region
        %s135 = ssub.s32 %s15, 1
      $region12: #{tpu_custom_call.1} parent=5 // pred_fallthru
        _
      %p136 = scmp.lt.s32.totalorder %s15, 2
      // Predicated region
      $region13: #{tpu_custom_call.1} parent=5 // pred_check
        %p137 = pneg %p136
      $region14: #{tpu_custom_call.1} parent=5 // pred_check_branch
        %139 = sbr.rel (%p137) target = $region16
      $region15: #{tpu_custom_call.1} parent=5 // pred_region
        // Predicated region
        $region17: #{tpu_custom_call.1} parent=15 // pred_check
          %p140 = pneg %p55
        $region18: #{tpu_custom_call.1} parent=15 // pred_check_branch
          %142 = sbr.rel (%p140) target = $region20
        $region19: #{tpu_custom_call.1} parent=15 // pred_region
          %s143 = sand.u32 %s45, 1
          %s144 = scalar_lea.sflag [#allocation4], %s143
          %s145 = sand.u32 %s45, 1
          %s146 = smul.addr %s145, 96
          %s147 = scalar_lea.vmem [#allocation3], %s146
          %s148 = smul.u32 %s22, 2
          %s149 = sadd.s32 %s148, %s23
          %p150 = scmp.lt.s32.totalorder %s149, 1
          %s151 = scalar_select %p150, %s149, 1
          %s152 = smul.u32 12, %s151
          %s153 = ssub.s32 13, %s152
          %p154 = scmp.lt.s32.totalorder %s153, 12
          %s155 = scalar_select %p154, %s153, 12
          %s156 = smul.u32 128, %s155
          %s158 = ssub.s32 1536, %s156
          %159 = vsyncadd %s144, %s158
          %p160 = scmp.ne.s32.totalorder 0, %s156
          %s161 = smul.addr %s152, 128
          %s162 = scalar_lea.hbm %s0, %s161
          %s163 = smul.u32 8, %s155
          %s164 = sshll.u32 %s147, 4
          %s165 = int_to_ptr.vmem [resolvable:$true] %s164
          %s166 = sshll.u32 %s163, 4
          %170 = dma.hbm_to_vmem [thread:$0]  (%p160), %s162, %s166, %s165, %s144, 128, 128, 8
        $region20: #{tpu_custom_call.1} parent=15 // pred_fallthru
          _
        // Predicated region
        $region21: #{tpu_custom_call.1} parent=15 // pred_check
          %p171 = pneg %p89
        $region22: #{tpu_custom_call.1} parent=15 // pred_check_branch
          %173 = sbr.rel (%p171) target = $region24
        $region23: #{tpu_custom_call.1} parent=15 // pred_region
          %s174 = sand.u32 %s79, 1
          %s175 = scalar_lea.sflag [#allocation7], %s174
          %s176 = sand.u32 %s79, 1
          %s177 = smul.addr %s176, 96
          %s178 = scalar_lea.vmem [#allocation6], %s177
          %s179 = smul.u32 %s22, 2
          %s180 = sadd.s32 %s179, %s23
          %p181 = scmp.lt.s32.totalorder %s180, 1
          %s182 = scalar_select %p181, %s180, 1
          %s183 = smul.u32 12, %s182
          %s184 = ssub.s32 13, %s183
          %p185 = scmp.lt.s32.totalorder %s184, 12
          %s186 = scalar_select %p185, %s184, 12
          %s187 = smul.u32 128, %s186
          %s189 = ssub.s32 1536, %s187
          %190 = vsyncadd %s175, %s189
          %p191 = scmp.ne.s32.totalorder 0, %s187
          %s192 = smul.addr %s183, 128
          %s193 = scalar_lea.hbm %s1, %s192
          %s194 = smul.u32 8, %s186
          %s195 = sshll.u32 %s178, 4
          %s196 = int_to_ptr.vmem [resolvable:$true] %s195
          %s197 = sshll.u32 %s194, 4
          %201 = dma.hbm_to_vmem [thread:$0]  (%p191), %s193, %s197, %s196, %s175, 128, 128, 8
        $region24: #{tpu_custom_call.1} parent=15 // pred_fallthru
          _
      $region16: #{tpu_custom_call.1} parent=5 // pred_fallthru
        _
      %p202 = scmp.le.s32.totalorder 1, %s15
      %p203 = scmp.lt.s32.totalorder %s15, 3
      %p204 = pnand %p202, %p203
      %p205 = pneg %p204
      // Predicated region
      $region25: #{tpu_custom_call.1} parent=5 // pred_check
        _
      $region26: #{tpu_custom_call.1} parent=5 // pred_check_branch
        %207 = sbr.rel (%p204) target = $region28
      $region27: #{tpu_custom_call.1} parent=5 // pred_region
        %s208 = ssub.s32 %s15, 1
        %s209 = sand.u32 %s48, 1
        %s210 = scalar_lea.sflag [#allocation4], %s209
        %s211 = sand.u32 %s48, 1
        %s212 = smul.addr %s211, 96
        %s213 = scalar_lea.vmem [#allocation3], %s212
        // Predicated region
        $region29: #{tpu_custom_call.1} parent=27 // pred_check
          %p214 = pneg %p61
        $region30: #{tpu_custom_call.1} parent=27 // pred_check_branch
          %216 = sbr.rel (%p214) target = $region32
        $region31: #{tpu_custom_call.1} parent=27 // pred_region
          %217 = dma.done %s210, 1536
        $region32: #{tpu_custom_call.1} parent=27 // pred_fallthru
          _
        %s218 = sand.u32 %s82, 1
        %s219 = scalar_lea.sflag [#allocation7], %s218
        %s220 = sand.u32 %s82, 1
        %s221 = smul.addr %s220, 96
        %s222 = scalar_lea.vmem [#allocation6], %s221
        // Predicated region
        $region33: #{tpu_custom_call.1} parent=27 // pred_check
          %p223 = pneg %p95
        $region34: #{tpu_custom_call.1} parent=27 // pred_check_branch
          %225 = sbr.rel (%p223) target = $region36
        $region35: #{tpu_custom_call.1} parent=27 // pred_region
          %226 = dma.done %s219, 1536
        $region36: #{tpu_custom_call.1} parent=27 // pred_fallthru
          _
        %s227 = sand.u32 %s48, 1
        %s228 = scalar_lea.sflag [#allocation4], %s227
        %s229 = sand.u32 %s48, 1
        %s230 = smul.addr %s229, 96
        %s231 = scalar_lea.vmem [#allocation3], %s230
        %p232 = pneg %p61
        %p233 = pneg %p58
        %s234 = sand.u32 %s82, 1
        %s235 = scalar_lea.sflag [#allocation7], %s234
        %s236 = sand.u32 %s82, 1
        %s237 = smul.addr %s236, 96
        %s238 = scalar_lea.vmem [#allocation6], %s237
        %p239 = pneg %p95
        %p240 = pneg %p92
        %p241 = pneg %p121
        %p242 = pneg %p118
        %s243 = smul.u32 %s24, 2
        %s244 = sadd.s32 %s243, %s25
        %p245 = scmp.lt.s32.totalorder %s244, 1
        %s246 = scalar_select %p245, %s244, 1
        %s247 = smul.u32 12, %s246
        %s248 = ssub.s32 13, %s247
        %p249 = scmp.lt.s32.totalorder %s248, 12
        %s250 = scalar_select %p249, %s248, 12
        %s251 = smul.u32 128, %s250
        %s252 = smul.u32 %s24, 2
        %s253 = sadd.s32 %s252, %s25
        %p254 = scmp.lt.s32.totalorder %s253, 1
        %s255 = scalar_select %p254, %s253, 1
        %s256 = smul.u32 12, %s255
        %s257 = ssub.s32 13, %s256
        %p258 = scmp.lt.s32.totalorder %s257, 12
        %s259 = scalar_select %p258, %s257, 12
        %s260 = smul.u32 128, %s259
        %p261 = scmp.eq.s32.totalorder %s25, 0
        // Predicated region
        $region37: #{tpu_custom_call.1} parent=27 // pred_check
          %p262 = pneg %p261
        $region38: #{tpu_custom_call.1} parent=27 // pred_check_branch
          %264 = sbr.rel (%p262) target = $region40
        $region39: #{tpu_custom_call.1} parent=27 // pred_region
          %265 = vst [vmem:[#allocation2] sm:$0xff] 0.0
        $region40: #{tpu_custom_call.1} parent=27 // pred_fallthru
          _
        %v266 = vld [vmem:[%s213] sm:$0xff]
        %v267 = vld [vmem:[%s213 + $0x8] sm:$0xff]
        %v268 = vld [vmem:[%s213 + $0x10] sm:$0xff]
        %v269 = vld [vmem:[%s213 + $0x18] sm:$0xff]
        %v270 = vld [vmem:[%s213 + $0x20] sm:$0xff]
        %v271 = vld [vmem:[%s213 + $0x28] sm:$0xff]
        %v272 = vld [vmem:[%s213 + $0x30] sm:$0xff]
        %v273 = vld [vmem:[%s213 + $0x38] sm:$0xff]
        %v274 = vld [vmem:[%s213 + $0x40] sm:$0xff]
        %v275 = vld [vmem:[%s213 + $0x48] sm:$0xff]
        %v276 = vld [vmem:[%s213 + $0x50] sm:$0xff]
        %v277 = vld [vmem:[%s213 + $0x58] sm:$0xff]
        %v278 = vld [vmem:[%s222] sm:$0xff]
        %v279 = vld [vmem:[%s222 + $0x8] sm:$0xff]
        %v280 = vld [vmem:[%s222 + $0x10] sm:$0xff]
        %v281 = vld [vmem:[%s222 + $0x18] sm:$0xff]
        %v282 = vld [vmem:[%s222 + $0x20] sm:$0xff]
        %v283 = vld [vmem:[%s222 + $0x28] sm:$0xff]
        %v284 = vld [vmem:[%s222 + $0x30] sm:$0xff]
        %v285 = vld [vmem:[%s222 + $0x38] sm:$0xff]
        %v286 = vld [vmem:[%s222 + $0x40] sm:$0xff]
        %v287 = vld [vmem:[%s222 + $0x48] sm:$0xff]
        %v288 = vld [vmem:[%s222 + $0x50] sm:$0xff]
        %v289 = vld [vmem:[%s222 + $0x58] sm:$0xff]
        %v290 = vmax.f32 %v266, -13.0
        %v291 = vmax.f32 %v267, -13.0
        %v292 = vmax.f32 %v268, -13.0
        %v293 = vmax.f32 %v269, -13.0
        %v294 = vmax.f32 %v270, -13.0
        %v295 = vmax.f32 %v271, -13.0
        %v296 = vmax.f32 %v272, -13.0
        %v297 = vmax.f32 %v273, -13.0
        %v298 = vmax.f32 %v274, -13.0
        %v299 = vmax.f32 %v275, -13.0
        %v300 = vmax.f32 %v276, -13.0
        %v301 = vmax.f32 %v277, -13.0
        %v302 = vmin.f32 %v290, 13.0
        %v303 = vmin.f32 %v291, 13.0
        %v304 = vmin.f32 %v292, 13.0
        %v305 = vmin.f32 %v293, 13.0
        %v306 = vmin.f32 %v294, 13.0
        %v307 = vmin.f32 %v295, 13.0
        %v308 = vmin.f32 %v296, 13.0
        %v309 = vmin.f32 %v297, 13.0
        %v310 = vmin.f32 %v298, 13.0
        %v311 = vmin.f32 %v299, 13.0
        %v312 = vmin.f32 %v300, 13.0
        %v313 = vmin.f32 %v301, 13.0
        %v314 = vmax.f32 %v302, 0.0
        %v315 = vmax.f32 %v303, 0.0
        %v316 = vmax.f32 %v304, 0.0
        %v317 = vmax.f32 %v305, 0.0
        %v318 = vmax.f32 %v306, 0.0
        %v319 = vmax.f32 %v307, 0.0
        %v320 = vmax.f32 %v308, 0.0
        %v321 = vmax.f32 %v309, 0.0
        %v322 = vmax.f32 %v310, 0.0
        %v323 = vmax.f32 %v311, 0.0
        %v324 = vmax.f32 %v312, 0.0
        %v325 = vmax.f32 %v313, 0.0
        %v326 = vmul.f32 %v302, %v278
        %v327 = vmul.f32 %v303, %v279
        %v328 = vmul.f32 %v304, %v280
        %v329 = vmul.f32 %v305, %v281
        %v330 = vmul.f32 %v306, %v282
        %v331 = vmul.f32 %v307, %v283
        %v332 = vmul.f32 %v308, %v284
        %v333 = vmul.f32 %v309, %v285
        %v334 = vmul.f32 %v310, %v286
        %v335 = vmul.f32 %v311, %v287
        %v336 = vmul.f32 %v312, %v288
        %v337 = vmul.f32 %v313, %v289
        %v338 = vsub.f32 %v314, %v326
        %v339 = vsub.f32 %v315, %v327
        %v340 = vsub.f32 %v316, %v328
        %v341 = vsub.f32 %v317, %v329
        %v342 = vsub.f32 %v318, %v330
        %v343 = vsub.f32 %v319, %v331
        %v344 = vsub.f32 %v320, %v332
        %v345 = vsub.f32 %v321, %v333
        %v346 = vsub.f32 %v322, %v334
        %v347 = vsub.f32 %v323, %v335
        %v348 = vsub.f32 %v324, %v336
        %v349 = vsub.f32 %v325, %v337
        %v350 = vand.u32 2147483647, %v302
        %v351 = vand.u32 2147483647, %v303
        %v352 = vand.u32 2147483647, %v304
        %v353 = vand.u32 2147483647, %v305
        %v354 = vand.u32 2147483647, %v306
        %v355 = vand.u32 2147483647, %v307
        %v356 = vand.u32 2147483647, %v308
        %v357 = vand.u32 2147483647, %v309
        %v358 = vand.u32 2147483647, %v310
        %v359 = vand.u32 2147483647, %v311
        %v360 = vand.u32 2147483647, %v312
        %v361 = vand.u32 2147483647, %v313
        %v362 = vsub.f32 0.0, %v350
        %v363 = vsub.f32 0.0, %v351
        %v364 = vsub.f32 0.0, %v352
        %v365 = vsub.f32 0.0, %v353
        %v366 = vsub.f32 0.0, %v354
        %v367 = vsub.f32 0.0, %v355
        %v368 = vsub.f32 0.0, %v356
        %v369 = vsub.f32 0.0, %v357
        %v370 = vsub.f32 0.0, %v358
        %v371 = vsub.f32 0.0, %v359
        %v372 = vsub.f32 0.0, %v360
        %v373 = vsub.f32 0.0, %v361
        %v374 = vmul.f32 %v362, 1.442695
        %v375 = vpow.pop %v374
        %v376 = vmul.f32 %v363, 1.442695
        %v377 = vpow.pop %v376
        %v378 = vmul.f32 %v364, 1.442695
        %v379 = vpow.pop %v378
        %v380 = vmul.f32 %v365, 1.442695
        %v381 = vpow.pop %v380
        %v382 = vmul.f32 %v366, 1.442695
        %v383 = vpow.pop %v382
        %v384 = vmul.f32 %v367, 1.442695
        %v385 = vpow.pop %v384
        %v386 = vmul.f32 %v368, 1.442695
        %v387 = vpow.pop %v386
        %v388 = vmul.f32 %v369, 1.442695
        %v389 = vpow.pop %v388
        %v390 = vmul.f32 %v370, 1.442695
        %v391 = vpow.pop %v390
        %v392 = vmul.f32 %v371, 1.442695
        %v393 = vpow.pop %v392
        %v394 = vmul.f32 %v372, 1.442695
        %v395 = vpow.pop %v394
        %v396 = vmul.f32 %v373, 1.442695
        %v397 = vpow.pop %v396
        %v398 = vadd.f32 %v375, 1.0
        %v399 = vlog2.pop %v398
        %v400 = vmul.f32 %v399, 0.6931472
        %v401 = vmul.f32 -0.5, %v375
        %v402 = vadd.f32 %v401, 1.0
        %v403 = vmul.f32 %v402, %v375
        %v404 = vand.u32 2147483647, %v375
        %vm405 = vcmp.lt.f32.partialorder %v404, 0.0004427343
        %v406 = vsel %vm405, %v403, %v400
        %v407 = vadd.f32 %v377, 1.0
        %v408 = vlog2.pop %v407
        %v409 = vmul.f32 %v408, 0.6931472
        %v410 = vmul.f32 -0.5, %v377
        %v411 = vadd.f32 %v410, 1.0
        %v412 = vmul.f32 %v411, %v377
        %v413 = vand.u32 2147483647, %v377
        %vm414 = vcmp.lt.f32.partialorder %v413, 0.0004427343
        %v415 = vsel %vm414, %v412, %v409
        %v416 = vadd.f32 %v379, 1.0
        %v417 = vlog2.pop %v416
        %v418 = vmul.f32 %v417, 0.6931472
        %v419 = vmul.f32 -0.5, %v379
        %v420 = vadd.f32 %v419, 1.0
        %v421 = vmul.f32 %v420, %v379
        %v422 = vand.u32 2147483647, %v379
        %vm423 = vcmp.lt.f32.partialorder %v422, 0.0004427343
        %v424 = vsel %vm423, %v421, %v418
        %v425 = vadd.f32 %v381, 1.0
        %v426 = vlog2.pop %v425
        %v427 = vmul.f32 %v426, 0.6931472
        %v428 = vmul.f32 -0.5, %v381
        %v429 = vadd.f32 %v428, 1.0
        %v430 = vmul.f32 %v429, %v381
        %v431 = vand.u32 2147483647, %v381
        %vm432 = vcmp.lt.f32.partialorder %v431, 0.0004427343
        %v433 = vsel %vm432, %v430, %v427
        %v434 = vadd.f32 %v383, 1.0
        %v435 = vlog2.pop %v434
        %v436 = vmul.f32 %v435, 0.6931472
        %v437 = vmul.f32 -0.5, %v383
        %v438 = vadd.f32 %v437, 1.0
        %v439 = vmul.f32 %v438, %v383
        %v440 = vand.u32 2147483647, %v383
        %vm441 = vcmp.lt.f32.partialorder %v440, 0.0004427343
        %v442 = vsel %vm441, %v439, %v436
        %v443 = vadd.f32 %v385, 1.0
        %v444 = vlog2.pop %v443
        %v445 = vmul.f32 %v444, 0.6931472
        %v446 = vmul.f32 -0.5, %v385
        %v447 = vadd.f32 %v446, 1.0
        %v448 = vmul.f32 %v447, %v385
        %v449 = vand.u32 2147483647, %v385
        %vm450 = vcmp.lt.f32.partialorder %v449, 0.0004427343
        %v451 = vsel %vm450, %v448, %v445
        %v452 = vadd.f32 %v387, 1.0
        %v453 = vlog2.pop %v452
        %v454 = vmul.f32 %v453, 0.6931472
        %v455 = vmul.f32 -0.5, %v387
        %v456 = vadd.f32 %v455, 1.0
        %v457 = vmul.f32 %v456, %v387
        %v458 = vand.u32 2147483647, %v387
        %vm459 = vcmp.lt.f32.partialorder %v458, 0.0004427343
        %v460 = vsel %vm459, %v457, %v454
        %v461 = vadd.f32 %v389, 1.0
        %v462 = vlog2.pop %v461
        %v463 = vmul.f32 %v462, 0.6931472
        %v464 = vmul.f32 -0.5, %v389
        %v465 = vadd.f32 %v464, 1.0
        %v466 = vmul.f32 %v465, %v389
        %v467 = vand.u32 2147483647, %v389
        %vm468 = vcmp.lt.f32.partialorder %v467, 0.0004427343
        %v469 = vsel %vm468, %v466, %v463
        %v470 = vadd.f32 %v391, 1.0
        %v471 = vlog2.pop %v470
        %v472 = vmul.f32 %v471, 0.6931472
        %v473 = vmul.f32 -0.5, %v391
        %v474 = vadd.f32 %v473, 1.0
        %v475 = vmul.f32 %v474, %v391
        %v476 = vand.u32 2147483647, %v391
        %vm477 = vcmp.lt.f32.partialorder %v476, 0.0004427343
        %v478 = vsel %vm477, %v475, %v472
        %v479 = vadd.f32 %v393, 1.0
        %v480 = vlog2.pop %v479
        %v481 = vmul.f32 %v480, 0.6931472
        %v482 = vmul.f32 -0.5, %v393
        %v483 = vadd.f32 %v482, 1.0
        %v484 = vmul.f32 %v483, %v393
        %v485 = vand.u32 2147483647, %v393
        %vm486 = vcmp.lt.f32.partialorder %v485, 0.0004427343
        %v487 = vsel %vm486, %v484, %v481
        %v488 = vadd.f32 %v395, 1.0
        %v489 = vlog2.pop %v488
        %v490 = vmul.f32 %v489, 0.6931472
        %v491 = vmul.f32 -0.5, %v395
        %v492 = vadd.f32 %v491, 1.0
        %v493 = vmul.f32 %v492, %v395
        %v494 = vand.u32 2147483647, %v395
        %vm495 = vcmp.lt.f32.partialorder %v494, 0.0004427343
        %v496 = vsel %vm495, %v493, %v490
        %v497 = vadd.f32 %v397, 1.0
        %v498 = vlog2.pop %v497
        %v499 = vmul.f32 %v498, 0.6931472
        %v500 = vmul.f32 -0.5, %v397
        %v501 = vadd.f32 %v500, 1.0
        %v502 = vmul.f32 %v501, %v397
        %v503 = vand.u32 2147483647, %v397
        %vm504 = vcmp.lt.f32.partialorder %v503, 0.0004427343
        %v505 = vsel %vm504, %v502, %v499
        %v506 = vadd.f32 %v338, %v406
        %v507 = vadd.f32 %v339, %v415
        %v508 = vadd.f32 %v340, %v424
        %v509 = vadd.f32 %v341, %v433
        %v510 = vadd.f32 %v342, %v442
        %v511 = vadd.f32 %v343, %v451
        %v512 = vadd.f32 %v344, %v460
        %v513 = vadd.f32 %v345, %v469
        %v514 = vadd.f32 %v346, %v478
        %v515 = vadd.f32 %v347, %v487
        %v516 = vadd.f32 %v348, %v496
        %v517 = vadd.f32 %v349, %v505
        %s518 = smul.u32 %s24, 2
        %s519 = sadd.s32 %s518, %s25
        %s520 = smul.u32 %s519, 96
        %s521 = sadd.s32 %s520, 96
        %p522 = scmp.gt.s32.totalorder %s521, 100
        %p523 = scmp.le.s32.totalorder %s521, 100
        // Predicated region
        $region41: #{tpu_custom_call.1} parent=27 // pred_check
          %p524 = pneg %p523
        $region42: #{tpu_custom_call.1} parent=27 // pred_check_branch
          %526 = sbr.rel (%p524) target = $region44
        $region43: #{tpu_custom_call.1} parent=27 // pred_region
          %v527 = vld [vmem:[#allocation2] sm:$0xff]
          %v528 = vadd.f32 %v506, %v507
          %v529 = vadd.f32 %v528, %v508
          %v530 = vadd.f32 %v529, %v509
          %v531 = vadd.f32 %v530, %v510
          %v532 = vadd.f32 %v531, %v511
          %v533 = vadd.f32 %v532, %v512
          %v534 = vadd.f32 %v533, %v513
          %v535 = vadd.f32 %v534, %v514
          %v536 = vadd.f32 %v535, %v515
          %v537 = vadd.f32 %v536, %v516
          %v538 = vadd.f32 %v537, %v517
          %v539 = vadd.f32 %v527, %v538
          %540 = vst [vmem:[#allocation2] sm:$0xff] %v539
        $region44: #{tpu_custom_call.1} parent=27 // pred_fallthru
          _
        // Predicated region
        $region45: #{tpu_custom_call.1} parent=27 // pred_check
          %p541 = pneg %p522
        $region46: #{tpu_custom_call.1} parent=27 // pred_check_branch
          %543 = sbr.rel (%p541) target = $region48
        $region47: #{tpu_custom_call.1} parent=27 // pred_region
          %v544 = vlaneseq
          %v545 = vshrl.u32 %v544, 7
          %v546 = vadd.s32 %v545, 8
          %v547 = vadd.s32 %v545, 16
          %v548 = vadd.s32 %v545, 24
          %v549 = vadd.s32 %v545, 32
          %v550 = vadd.s32 %v545, 40
          %v551 = vadd.s32 %v545, 48
          %v552 = vadd.s32 %v545, 56
          %v553 = vadd.s32 %v545, 64
          %v554 = vadd.s32 %v545, 72
          %v555 = vadd.s32 %v545, 80
          %v556 = vadd.s32 %v545, 88
          %v557 = vstv %s520
          %v558 = vadd.s32 %v557, %v545
          %v559 = vadd.s32 %v557, %v546
          %v560 = vadd.s32 %v557, %v547
          %v561 = vadd.s32 %v557, %v548
          %v562 = vadd.s32 %v557, %v549
          %v563 = vadd.s32 %v557, %v550
          %v564 = vadd.s32 %v557, %v551
          %v565 = vadd.s32 %v557, %v552
          %v566 = vadd.s32 %v557, %v553
          %v567 = vadd.s32 %v557, %v554
          %v568 = vadd.s32 %v557, %v555
          %v569 = vadd.s32 %v557, %v556
          %vm570 = vcmp.lt.s32.totalorder %v558, 100
          %vm571 = vcmp.lt.s32.totalorder %v559, 100
          %vm572 = vcmp.lt.s32.totalorder %v560, 100
          %vm573 = vcmp.lt.s32.totalorder %v561, 100
          %vm574 = vcmp.lt.s32.totalorder %v562, 100
          %vm575 = vcmp.lt.s32.totalorder %v563, 100
          %vm576 = vcmp.lt.s32.totalorder %v564, 100
          %vm577 = vcmp.lt.s32.totalorder %v565, 100
          %vm578 = vcmp.lt.s32.totalorder %v566, 100
          %vm579 = vcmp.lt.s32.totalorder %v567, 100
          %vm580 = vcmp.lt.s32.totalorder %v568, 100
          %vm581 = vcmp.lt.s32.totalorder %v569, 100
          %v582 = vld [vmem:[#allocation2] sm:$0xff]
          %v583 = vsel %vm570, %v506, 0.0
          %v584 = vsel %vm571, %v507, 0.0
          %v585 = vsel %vm572, %v508, 0.0
          %v586 = vsel %vm573, %v509, 0.0
          %v587 = vsel %vm574, %v510, 0.0
          %v588 = vsel %vm575, %v511, 0.0
          %v589 = vsel %vm576, %v512, 0.0
          %v590 = vsel %vm577, %v513, 0.0
          %v591 = vsel %vm578, %v514, 0.0
          %v592 = vsel %vm579, %v515, 0.0
          %v593 = vsel %vm580, %v516, 0.0
          %v594 = vsel %vm581, %v517, 0.0
          %v595 = vadd.f32 %v583, %v584
          %v596 = vadd.f32 %v595, %v585
          %v597 = vadd.f32 %v596, %v586
          %v598 = vadd.f32 %v597, %v587
          %v599 = vadd.f32 %v598, %v588
          %v600 = vadd.f32 %v599, %v589
          %v601 = vadd.f32 %v600, %v590
          %v602 = vadd.f32 %v601, %v591
          %v603 = vadd.f32 %v602, %v592
          %v604 = vadd.f32 %v603, %v593
          %v605 = vadd.f32 %v604, %v594
          %v606 = vadd.f32 %v582, %v605
          %607 = vst [vmem:[#allocation2] sm:$0xff] %v606
        $region48: #{tpu_custom_call.1} parent=27 // pred_fallthru
          _
        %p608 = scmp.eq.s32.totalorder %s25, 1
        // Predicated region
        $region49: #{tpu_custom_call.1} parent=27 // pred_check
          %p609 = pneg %p608
        $region50: #{tpu_custom_call.1} parent=27 // pred_check_branch
          %611 = sbr.rel (%p609) target = $region52
        $region51: #{tpu_custom_call.1} parent=27 // pred_region
          %v612 = vld [vmem:[#allocation2] sm:$0xff]
          %613 = vadd.xlane.f32.xlu0 %v612
          %v614 = vpop.xlane.xlu0 %613
          %v615 = vrot.slane %v614, 4
          %v616 = vadd.f32 %v614, %v615
          %v617 = vrot.slane %v616, 2
          %v618 = vadd.f32 %v616, %v617
          %v619 = vrot.slane %v618, 1
          %v620 = vadd.f32 %v618, %v619
          %s621 = vtos %v620
          %s622 = scalar_lea.smem [#allocation8], 0
          %623 = sst [smem:[%s622]] %s621
        $region52: #{tpu_custom_call.1} parent=27 // pred_fallthru
          _
        // Predicated region
        $region53: #{tpu_custom_call.1} parent=27 // pred_check
          %p624 = pneg %p118
        $region54: #{tpu_custom_call.1} parent=27 // pred_check_branch
          %626 = sbr.rel (%p624) target = $region56
        $region55: #{tpu_custom_call.1} parent=27 // pred_region
          %s628 = ssub.s32 16, 16
          %629 = vsyncadd [#allocation5], %s628
          %s630 = smul.addr %s24, 16
          %s631 = scalar_lea.hbm %s2, %s630
          %634 = dma.smem_to_hbm [#allocation8], 16, %s631, [#allocation5]
        $region56: #{tpu_custom_call.1} parent=27 // pred_fallthru
          _
        // Predicated region
        $region57: #{tpu_custom_call.1} parent=27 // pred_check
          %p635 = pneg %p118
        $region58: #{tpu_custom_call.1} parent=27 // pred_check_branch
          %637 = sbr.rel (%p635) target = $region60
        $region59: #{tpu_custom_call.1} parent=27 // pred_region
          %638 = dma.done [#allocation5], 16
        $region60: #{tpu_custom_call.1} parent=27 // pred_fallthru
          _
        %639 = sfence
      $region28: #{tpu_custom_call.1} parent=5 // pred_fallthru
        _
      %p640 = scmp.le.s32.totalorder 2, %s15
      // Predicated region
      $region61: #{tpu_custom_call.1} parent=5 // pred_check
        %p641 = pneg %p640
      $region62: #{tpu_custom_call.1} parent=5 // pred_check_branch
        %643 = sbr.rel (%p641) target = $region64
      $region63: #{tpu_custom_call.1} parent=5 // pred_region
        %s644 = ssub.s32 %s15, 2
      $region64: #{tpu_custom_call.1} parent=5 // pred_fallthru
        _
    $region6: #{tpu_custom_call.1} parent=1 // loop_footer
      %s19 = sadd.s32 1, %s15
    $region7: #{tpu_custom_call.1} parent=1 // loop_footer_branch
      %14 = sbr.rel target = $region3
    $region8: #{tpu_custom_call.1} parent=1 // loop_exit
      _
    %645 = vsyncpa [#allocation4], 1
    %s646 = scalar_lea.sflag [#allocation4], 1
    %647 = vsyncpa %s646, 1
    %648 = vsyncpa [#allocation7], 1
    %s649 = scalar_lea.sflag [#allocation7], 1
    %650 = vsyncpa %s649, 1
    %651 = vsyncpa [#allocation5], 1
    %s652 = scalar_lea.sflag [#allocation5], 1
    %653 = vsyncpa %s652, 1

</llo_original>
